<compile_context>
chip_gen: v7x
topology: tpu7x:2x2x1
jax: 0.10.0
libtpu: 0.0.40
codegen_flags: <defaults>
</compile_context>

<pallas_src>
import math
from functools import lru_cache

import jax
import jax.numpy as jnp
from jax.experimental import pallas as pl
from jax.experimental.pallas import tpu as pltpu

_LANES = 128
_SUBLANES = 8
# Dtype-aware per-tile byte budget: 8 MiB per tile.  With input + output each
# double-buffered, resident VMEM ~= 4 x 8 MiB = 32 MiB, which fits under the
# explicit 48 MiB scoped-VMEM limit below and leaves headroom inside v7x's
# 64 MiB physical VMEM (v5e/v6e have 128 MiB physical).
_TILE_BYTES = 8 * 1024 * 1024
_VMEM_LIMIT_BYTES = 48 * 1024 * 1024


def _copy_kernel(x_ref, o_ref):
    # Full-tile load + full-tile store on the lane-dense (rows, 128) view.
    o_ref[...] = x_ref[...]


@lru_cache(maxsize=None)
def _build_copy_call(rows, dtype_name):
    """Build (and cache) the pallas_call for a lane-dense (rows, 128) slab."""
    dtype = jnp.dtype(dtype_name)
    # Rows per tile from the byte budget (dtype-aware), rounded down to a
    # multiple of 8 sublanes so the block shape satisfies the (8, 128) rule.
    max_block_rows = max(_SUBLANES, _TILE_BYTES // (_LANES * dtype.itemsize))
    max_block_rows = (max_block_rows // _SUBLANES) * _SUBLANES
    block_rows = min(rows, max_block_rows)
    grid = (pl.cdiv(rows, block_rows),)
    spec = pl.BlockSpec((block_rows, _LANES), lambda i: (i, 0))
    return pl.pallas_call(
        _copy_kernel,
        out_shape=jax.ShapeDtypeStruct((rows, _LANES), dtype),
        grid=grid,
        in_specs=[spec],
        out_specs=spec,
        compiler_params=pltpu.CompilerParams(
            # "parallel": independent row tiles (lets multi-TC chips shard).
            dimension_semantics=("parallel",),
            vmem_limit_bytes=_VMEM_LIMIT_BYTES,
        ),
    )


@jax.jit
def _materialized_copy(x: jax.Array) -> jax.Array:
    """Identity copy through the Pallas kernel, producing a fresh buffer."""
    shape = x.shape
    total = math.prod(shape)
    pad_unit = _SUBLANES * _LANES  # 1024: full sublane x lane occupancy
    padded_total = ((total + pad_unit - 1) // pad_unit) * pad_unit

    flat = x.reshape((total,))
    if padded_total != total:
        # Fallback for sizes not divisible by 128: pad to a multiple of 8*128
        # and keep the same lane-dense tiled grid (no (1, total) single block,
        # no masked partial stores, no VMEM-OOM risk for large inputs).
        flat = jnp.pad(flat, (0, padded_total - total))

    rows = padded_total // _LANES
    call = _build_copy_call(rows, x.dtype.name)
    y = call(flat.reshape((rows, _LANES)))
    return y.reshape((padded_total,))[:total].reshape(shape)


def neural_network_forward(x: jax.Array, materialize: bool = False) -> jax.Array:
    """Forward pass of the abstract NeuralNetwork base class (identity).

    Default: return `x` directly — an identity copy kernel is pure HBM
    read + write with zero compute, so the best optimization is not to launch
    it.  Pass materialize=True to force a fresh buffer via the Pallas kernel.
    """
    if not materialize:
        return x
    return _materialized_copy(x)


if __name__ == "__main__":
    key = jax.random.PRNGKey(0)
    # NCHW input, small shape: batch=2, channels=4, spatial=16x16.
    shape = (2, 4, 16, 16)
    x = jax.random.normal(key, shape, dtype=jnp.float32)

    # Default path: identity short-circuit, no kernel launch / HBM traffic.
    y_fast = neural_network_forward(x)
    assert y_fast is x

    # Materialized path: run the Pallas copy kernel once.
    y = neural_network_forward(x, materialize=True)
    y = jax.block_until_ready(y)
    assert y.shape == shape and y.dtype == jnp.float32
    # No donation/aliasing: x is still valid and can be compared directly.
    assert bool(jnp.all(y == x))

    # Also exercise the non-128-divisible (padded) fallback path.
    x_odd = jax.random.normal(jax.random.PRNGKey(1), (3, 5, 7), dtype=jnp.float32)
    y_odd = jax.block_until_ready(neural_network_forward(x_odd, materialize=True))
    assert y_odd.shape == x_odd.shape
    assert bool(jnp.all(y_odd == x_odd))

    print("KERNEL_OK")
</pallas_src>

<mosaic_0001>
module attributes {stable_mosaic.version = 11 : i64} {
  func.func @_copy_kernel(%arg0: i32, %arg1: memref<16x128xf32, #tpu.memory_space<vmem>>, %arg2: memref<16x128xf32, #tpu.memory_space<vmem>>) attributes {dimension_semantics = [#tpu.dimension_semantics<parallel>], iteration_bounds = array<i64: 1>, scalar_prefetch = 0 : i64, scratch_operands = 0 : i64, tpu.core_type = #tpu.core_type<tc>, window_params = [{transform_indices = @transform_0, window_bounds = array<i64: 16, 128>}, {transform_indices = @transform_1, window_bounds = array<i64: 16, 128>}]} {
    %c0 = arith.constant 0 : index
    %c0_0 = arith.constant 0 : index
    %0 = vector.load %arg1[%c0, %c0_0] : memref<16x128xf32, #tpu.memory_space<vmem>>, vector<16x128xf32>
    %c0_1 = arith.constant 0 : index
    %c0_2 = arith.constant 0 : index
    %1 = vector.load %arg2[%c0_1, %c0_2] : memref<16x128xf32, #tpu.memory_space<vmem>>, vector<16x128xf32>
    tpu.vector_store %arg2[%c0_1, %c0_2], %0 {strides = array<i32>} : memref<16x128xf32, #tpu.memory_space<vmem>>, vector<16x128xf32>,
    return
  }
  func.func @transform_0(%arg0: i32) -> (i32, i32) {
    %c0_i32 = arith.constant 0 : i32
    %c0_i32_0 = arith.constant 0 : i32
    return %arg0, %c0_i32 : i32, i32
  }
  func.func @transform_1(%arg0: i32) -> (i32, i32) {
    %c0_i32 = arith.constant 0 : i32
    %c0_i32_0 = arith.constant 0 : i32
    return %arg0, %c0_i32 : i32, i32
  }
}

</mosaic_0001>

<llo_original>
// kernel: _materialized_copy.1
$region0: #{_materialized_copy.1}
  #allocation0 [shape = 'u32[]', space=smem, size = 0x4, offset = 0x4, fixed_abs, tag = 'smem constant byte address 0x4 - core index']
  #allocation1 [shape = 'u32[144,128]{1,0:T(1,128)}', space=vmem, size = 0x12000, scoped, tag = 'internal scratch']
  %s0 = inlined_call_operand.vmem [shape: f32[16,128], index: 0, kind: input, shape index: {}]
  %s1 = inlined_call_operand.vmem [shape: f32[16,128], index: 1, kind: output, shape index: {}]
  %s2 = sld [smem:[#allocation0]]
  $region14: #{_materialized_copy.1} parent=0
    _
  %s4 = ssub.s32 1, %s2
  %s5 = scalar_select 0, %s4, %s2
  // Predicated region
  $region2: #{_materialized_copy.1} parent=0 // pred_check
    _
  $region3: #{_materialized_copy.1} parent=0 // pred_check_branch
    %7 = sbr.rel (0) target = $region5
  $region4: #{_materialized_copy.1} parent=0 // pred_region
    _
  $region5: #{_materialized_copy.1} parent=0 // pred_fallthru
    _
  %v8 = vld [vmem:[%s0] sm:$0xff]
  %v9 = vld [vmem:[%s0 + $0x8] sm:$0xff]
  %10 = vst [vmem:[%s1] sm:$0xff] %v8
  %11 = vst [vmem:[%s1 + $0x8] sm:$0xff] %v9
  // Predicated region
  $region6: #{_materialized_copy.1} parent=0 // pred_check
    _
  $region7: #{_materialized_copy.1} parent=0 // pred_check_branch
    %13 = sbr.rel (0) target = $region9
  $region8: #{_materialized_copy.1} parent=0 // pred_region
    _
  $region9: #{_materialized_copy.1} parent=0 // pred_fallthru
    _
  // Predicated region
  $region10: #{_materialized_copy.1} parent=0 // pred_check
    _
  $region11: #{_materialized_copy.1} parent=0 // pred_check_branch
    %15 = sbr.rel (0) target = $region13
  $region12: #{_materialized_copy.1} parent=0 // pred_region
    _
  $region13: #{_materialized_copy.1} parent=0 // pred_fallthru
    _

</llo_original>
